<compile_context>
chip_gen: v7x
topology: tpu7x:2x2x1
jax: 0.10.0
libtpu: 0.0.40
codegen_flags: <defaults>
</compile_context>

<pallas_src>
import functools

import jax
import jax.numpy as jnp
from jax import lax
from jax.experimental import pallas as pl
from jax.experimental.pallas import tpu as pltpu


def _round_up(x, m):
    return ((x + m - 1) // m) * m


def _image_embeddings_kernel(*refs, has_mask, matmul_dtype):
    if has_mask:
        (x_ref, m_ref, pid_ref, mtbl_ref,
         w_ref, b_ref, ptbl_ref, ln2_g_ref, ln2_b_ref, out_ref) = refs
    else:
        (x_ref, pid_ref,
         w_ref, b_ref, ptbl_ref, ln2_g_ref, ln2_b_ref, out_ref) = refs

    x = x_ref[...].astype(jnp.float32)                      # (TM, D)

    if has_mask:
        # mask_embedding lookup for indices {0,1}:
        #   x + row0 + m * (row1 - row0)   (delta hoisted once per tile)
        mtbl = mtbl_ref[...].astype(jnp.float32)            # (2, D)
        row0 = mtbl[0:1, :]
        delta = mtbl[1:2, :] - row0
        m = m_ref[...].astype(jnp.float32)                  # (TM, 1)
        x = x + row0 + m * delta
    # When img_masks is None the module skips the add entirely; so do we.

    # img_LayerNorm normalization (eps=1e-5, f32 math).  The affine (gamma/beta)
    # has been folded into (w_ref, b_ref) by the wrapper, so only the
    # normalization remains here.  lax.rsqrt runs on the EUP (its own VLIW slot).
    mu = jnp.mean(x, axis=-1, keepdims=True)
    xc = x - mu
    var = jnp.mean(xc * xc, axis=-1, keepdims=True)
    xn = xc * lax.rsqrt(var + 1e-5)

    # img_linear (with folded LN affine) on the MXU: bf16 operands (2x MXU
    # throughput, half the weight footprint), f32 accumulation.
    y = jnp.dot(xn.astype(matmul_dtype), w_ref[...],
                preferred_element_type=jnp.float32) + b_ref[...]

    # Position-embedding gather, in-kernel, as a one-hot matmul against the
    # VMEM-resident table.  Exact in f32 (one-hot selects rows), uses spare MXU
    # cycles, and removes the extra (N, H) HBM round-trip of a host-side gather.
    ids = pid_ref[...]                                      # (TM, 1) int32
    tm = ids.shape[0]
    n_pos = ptbl_ref.shape[0]
    iota = lax.broadcasted_iota(jnp.int32, (tm, n_pos), 1)
    onehot = (iota == ids).astype(jnp.float32)
    y = y + jnp.dot(onehot, ptbl_ref[...], preferred_element_type=jnp.float32)

    # final LayerNorm (over hidden, eps=1e-5); dropout = identity (eval).
    mu2 = jnp.mean(y, axis=-1, keepdims=True)
    yc = y - mu2
    var2 = jnp.mean(yc * yc, axis=-1, keepdims=True)
    yn = yc * lax.rsqrt(var2 + 1e-5)
    out_ref[...] = (yn * ln2_g_ref[...] + ln2_b_ref[...]).astype(out_ref.dtype)


def image_embeddings_forward(
    img_feat,            # (B, L, D_img) f32
    params,              # dict of parameters (see init_params)
    img_pos_ids=None,    # (B, L) int32 or None
    img_masks=None,      # (B, L) int (0/1) or None
    *,
    tile_rows=512,       # upper bound; actual tile picked from VMEM capacity
    matmul_dtype=jnp.bfloat16,
    out_dtype=jnp.float32,   # set jnp.bfloat16 if downstream accepts it (halves HBM writes)
):
    B, L, D = img_feat.shape
    H = params["img_linear_w"].shape[0]
    P = params["pos_table"].shape[0]
    N = B * L
    has_mask = img_masks is not None

    if img_pos_ids is None:
        img_pos_ids = jnp.broadcast_to(jnp.arange(L, dtype=jnp.int32)[None, :], (B, L))

    x2d = img_feat.reshape(N, D).astype(jnp.float32)
    pid2d = img_pos_ids.astype(jnp.int32).reshape(N, 1)
    masks2d = img_masks.astype(jnp.float32).reshape(N, 1) if has_mask else None

    # Fold img_LayerNorm's affine into the linear layer (trace-time precompute):
    #   (xn * g + b) @ W^T + bias == xn @ (g[:, None] * W^T) + (bias + b @ W^T)
    w_t_f32 = params["img_linear_w"].T.astype(jnp.float32)                    # (D, H)
    w_fold = (params["img_ln_g"].astype(jnp.float32)[:, None] * w_t_f32
              ).astype(matmul_dtype)                                          # (D, H) bf16
    b_fold = (params["img_linear_b"].astype(jnp.float32)
              + params["img_ln_b"].astype(jnp.float32) @ w_t_f32).reshape(1, H)

    ln2_g = params["ln_g"].reshape(1, H).astype(jnp.float32)
    ln2_b = params["ln_b"].reshape(1, H).astype(jnp.float32)
    pos_tbl = params["pos_table"].astype(jnp.float32)                         # (P, H)
    mask_tbl = params["mask_table"].astype(jnp.float32)                       # (2, D)

    # --- VMEM-aware row-tile sizing (v5e/v6e: 128 MiB, v7x: 64 MiB) ---
    try:
        vmem_cap = int(getattr(pltpu.get_tpu_info(), "vmem_capacity_bytes", 64 << 20))
    except Exception:
        vmem_cap = 64 << 20
    w_isz = jnp.dtype(matmul_dtype).itemsize
    o_isz = jnp.dtype(out_dtype).itemsize
    per_row_pipe = D * 4 + 4 + (4 if has_mask else 0) + H * o_isz   # pipelined operand rows
    per_row_work = D * 2 + P * 4 + 2 * H * 4                        # in-kernel temps (rough)
    const_bytes = D * H * w_isz + P * H * 4 + (2 * D * 4 if has_mask else 0) + 3 * H * 4
    budget = int(0.80 * vmem_cap) - 2 * const_bytes - (4 << 20)
    tm_budget = max(8, budget // max(2 * per_row_pipe + per_row_work, 1))
    tm = max(8, min(tile_rows, tm_budget, _round_up(N, 8)))
    tm = (tm // 8) * 8                                               # sublane granule

    n_pad = _round_up(N, tm)
    if n_pad != N:
        pad = n_pad - N
        x2d = jnp.pad(x2d, ((0, pad), (0, 0)))
        pid2d = jnp.pad(pid2d, ((0, pad), (0, 0)))
        if has_mask:
            masks2d = jnp.pad(masks2d, ((0, pad), (0, 0)))
    grid = (n_pad // tm,)

    vmem_limit = 2 * tm * per_row_pipe + tm * per_row_work + 2 * const_bytes + (8 << 20)
    vmem_limit = int(min(max(vmem_limit, 32 << 20), int(0.9 * vmem_cap)))

    kernel = functools.partial(_image_embeddings_kernel,
                               has_mask=has_mask, matmul_dtype=matmul_dtype)

    def call(single_buffer_params):
        def const_spec(shape):
            # Grid-invariant operands: one VMEM copy instead of a double buffer
            # -> frees VMEM for larger row tiles (critical on v7x's 64 MiB).
            if single_buffer_params:
                return pl.BlockSpec(shape, lambda i: (0, 0),
                                    pipeline_mode=pl.Buffered(1))
            return pl.BlockSpec(shape, lambda i: (0, 0))

        row_d = pl.BlockSpec((tm, D), lambda i: (i, 0))
        row_1 = pl.BlockSpec((tm, 1), lambda i: (i, 0))
        row_h = pl.BlockSpec((tm, H), lambda i: (i, 0))

        in_specs = [row_d]
        operands = [x2d]
        if has_mask:
            in_specs.append(row_1)
            operands.append(masks2d)
        in_specs.append(row_1)
        operands.append(pid2d)
        if has_mask:
            in_specs.append(const_spec((2, D)))
            operands.append(mask_tbl)
        in_specs += [const_spec((D, H)), const_spec((1, H)),
                     const_spec((P, H)),
                     const_spec((1, H)), const_spec((1, H))]
        operands += [w_fold, b_fold, pos_tbl, ln2_g, ln2_b]

        return pl.pallas_call(
            kernel,
            out_shape=jax.ShapeDtypeStruct((n_pad, H), out_dtype),
            grid_spec=pltpu.PrefetchScalarGridSpec(
                num_scalar_prefetch=0,
                grid=grid,
                in_specs=in_specs,
                out_specs=row_h,
            ),
            compiler_params=pltpu.CompilerParams(
                # "parallel" lets Mosaic split the row grid across v7x's 2 TCs.
                dimension_semantics=("parallel",),
                vmem_limit_bytes=vmem_limit,
            ),
        )(*operands)

    try:
        out = call(single_buffer_params=True)
    except Exception:
        # Fallback for jax builds without single-buffer pipeline_mode support;
        # identical semantics, just default double-buffered constant operands.
        out = call(single_buffer_params=False)

    return out[:N].reshape(B, L, H)


def reference_forward(img_feat, params, img_pos_ids=None, img_masks=None):
    """Pure-JAX f32 reference mirroring the PyTorch module (eval mode)."""
    B, L, D = img_feat.shape
    if img_pos_ids is None:
        img_pos_ids = jnp.broadcast_to(jnp.arange(L, dtype=jnp.int32)[None, :], (B, L))
    x = img_feat
    if img_masks is not None:
        x = x + params["mask_table"][img_masks.astype(jnp.int32)]

    def ln(v, g, b):
        mu = jnp.mean(v, -1, keepdims=True)
        var = jnp.mean((v - mu) ** 2, -1, keepdims=True)
        return (v - mu) / jnp.sqrt(var + 1e-5) * g + b

    xn = ln(x, params["img_ln_g"], params["img_ln_b"])
    tr = jnp.dot(xn, params["img_linear_w"].T,
                 preferred_element_type=jnp.float32) + params["img_linear_b"]
    pos = params["pos_table"][img_pos_ids]
    emb = ln(tr + pos, params["ln_g"], params["ln_b"])
    return emb


def init_params(key, img_dim, hidden, max_img_seq_len):
    ks = jax.random.split(key, 8)
    return {
        "img_linear_w": 0.2 * jax.random.normal(ks[0], (hidden, img_dim), jnp.float32),
        "img_linear_b": 0.1 * jax.random.normal(ks[1], (hidden,), jnp.float32),
        "img_ln_g": 1.0 + 0.1 * jax.random.normal(ks[2], (img_dim,), jnp.float32),
        "img_ln_b": 0.1 * jax.random.normal(ks[3], (img_dim,), jnp.float32),
        "pos_table": 0.2 * jax.random.normal(ks[4], (max_img_seq_len, hidden), jnp.float32),
        # padding_idx=0 -> row 0 zeroed, matching nn.Embedding(2, D, padding_idx=0).
        "mask_table": (0.5 * jax.random.normal(ks[5], (2, img_dim), jnp.float32)
                       ).at[0].set(0.0),
        "ln_g": 1.0 + 0.1 * jax.random.normal(ks[6], (hidden,), jnp.float32),
        "ln_b": 0.1 * jax.random.normal(ks[7], (hidden,), jnp.float32),
    }


if __name__ == "__main__":
    B, L, IMG_DIM, HIDDEN, MAX_LEN = 2, 8, 32, 32, 16

    key = jax.random.PRNGKey(0)
    k_param, k_feat, k_mask = jax.random.split(key, 3)

    params = init_params(k_param, IMG_DIM, HIDDEN, MAX_LEN)
    img_feat = jax.random.normal(k_feat, (B, L, IMG_DIM), jnp.float32)
    img_masks = (jax.random.uniform(k_mask, (B, L)) > 0.5).astype(jnp.int32)

    # With masks.
    out = jax.block_until_ready(
        image_embeddings_forward(img_feat, params, img_masks=img_masks))
    assert out.shape == (B, L, HIDDEN)
    ref = reference_forward(img_feat, params, img_masks=img_masks)
    assert jnp.allclose(out, ref, atol=3e-2, rtol=3e-2), "mismatch vs f32 reference (mask path)"

    # Without masks (mask-embedding add skipped entirely, matching the module).
    out_nm = jax.block_until_ready(image_embeddings_forward(img_feat, params))
    ref_nm = reference_forward(img_feat, params)
    assert jnp.allclose(out_nm, ref_nm, atol=3e-2, rtol=3e-2), "mismatch vs f32 reference (no-mask path)"

    print("KERNEL_OK")
</pallas_src>

<mosaic_0001>
module attributes {stable_mosaic.version = 11 : i64} {
  func.func @_image_embeddings_kernel(%arg0: i32, %arg1: memref<16x32xf32, #tpu.memory_space<vmem>>, %arg2: memref<16x1xf32, #tpu.memory_space<vmem>>, %arg3: memref<16x1xi32, #tpu.memory_space<vmem>>, %arg4: memref<2x32xf32, #tpu.memory_space<vmem>>, %arg5: memref<32x32xbf16, #tpu.memory_space<vmem>>, %arg6: memref<1x32xf32, #tpu.memory_space<vmem>>, %arg7: memref<16x32xf32, #tpu.memory_space<vmem>>, %arg8: memref<1x32xf32, #tpu.memory_space<vmem>>, %arg9: memref<1x32xf32, #tpu.memory_space<vmem>>, %arg10: memref<16x32xf32, #tpu.memory_space<vmem>>) attributes {dimension_semantics = [#tpu.dimension_semantics<parallel>], iteration_bounds = array<i64: 1>, scalar_prefetch = 0 : i64, scratch_operands = 0 : i64, tpu.core_type = #tpu.core_type<tc>, window_params = [{transform_indices = @transform_0, window_bounds = array<i64: 16, 32>}, {transform_indices = @transform_1, window_bounds = array<i64: 16, 1>}, {transform_indices = @transform_2, window_bounds = array<i64: 16, 1>}, {pipeline_mode = #tpu.pipeline_mode<synchronous>, transform_indices = @transform_3, window_bounds = array<i64: 2, 32>}, {pipeline_mode = #tpu.pipeline_mode<synchronous>, transform_indices = @transform_4, window_bounds = array<i64: 32, 32>}, {pipeline_mode = #tpu.pipeline_mode<synchronous>, transform_indices = @transform_5, window_bounds = array<i64: 1, 32>}, {pipeline_mode = #tpu.pipeline_mode<synchronous>, transform_indices = @transform_6, window_bounds = array<i64: 16, 32>}, {pipeline_mode = #tpu.pipeline_mode<synchronous>, transform_indices = @transform_7, window_bounds = array<i64: 1, 32>}, {pipeline_mode = #tpu.pipeline_mode<synchronous>, transform_indices = @transform_8, window_bounds = array<i64: 1, 32>}, {transform_indices = @transform_9, window_bounds = array<i64: 16, 32>}]} {
    %c0 = arith.constant 0 : index
    %c0_0 = arith.constant 0 : index
    %0 = vector.load %arg1[%c0, %c0_0] : memref<16x32xf32, #tpu.memory_space<vmem>>, vector<16x32xf32>
    %c0_1 = arith.constant 0 : index
    %c0_2 = arith.constant 0 : index
    %1 = vector.load %arg4[%c0_1, %c0_2] : memref<2x32xf32, #tpu.memory_space<vmem>>, vector<2x32xf32>
    %2 = vector.extract_strided_slice %1 {offsets = [0, 0], sizes = [1, 32], strides = [1, 1]} : vector<2x32xf32> to vector<1x32xf32>
    %3 = vector.extract_strided_slice %1 {offsets = [1, 0], sizes = [1, 32], strides = [1, 1]} : vector<2x32xf32> to vector<1x32xf32>
    %4 = arith.subf %3, %2 : vector<1x32xf32>
    %c0_3 = arith.constant 0 : index
    %c0_4 = arith.constant 0 : index
    %5 = vector.load %arg2[%c0_3, %c0_4] : memref<16x1xf32, #tpu.memory_space<vmem>>, vector<16x1xf32>
    %6 = vector.broadcast %2 : vector<1x32xf32> to vector<16x32xf32>
    %7 = arith.addf %0, %6 : vector<16x32xf32>
    %8 = vector.broadcast %5 : vector<16x1xf32> to vector<16x32xf32>
    %9 = vector.broadcast %4 : vector<1x32xf32> to vector<16x32xf32>
    %10 = arith.mulf %8, %9 : vector<16x32xf32>
    %11 = arith.addf %7, %10 : vector<16x32xf32>
    %cst = arith.constant dense<0.000000e+00> : vector<16xf32>
    %12 = vector.multi_reduction <add>, %11, %cst [1] : vector<16x32xf32> to vector<16xf32>
    %13 = vector.shape_cast %12 : vector<16xf32> to vector<16x1xf32>
    %cst_5 = arith.constant 3.200000e+01 : f32
    %14 = vector.broadcast %cst_5 : f32 to vector<16x1xf32>
    %15 = arith.divf %13, %14 : vector<16x1xf32>
    %16 = vector.broadcast %15 : vector<16x1xf32> to vector<16x32xf32>
    %17 = arith.subf %11, %16 : vector<16x32xf32>
    %18 = arith.mulf %17, %17 : vector<16x32xf32>
    %cst_6 = arith.constant dense<0.000000e+00> : vector<16xf32>
    %19 = vector.multi_reduction <add>, %18, %cst_6 [1] : vector<16x32xf32> to vector<16xf32>
    %20 = vector.shape_cast %19 : vector<16xf32> to vector<16x1xf32>
    %cst_7 = arith.constant 3.200000e+01 : f32
    %21 = vector.broadcast %cst_7 : f32 to vector<16x1xf32>
    %22 = arith.divf %20, %21 : vector<16x1xf32>
    %cst_8 = arith.constant 9.99999974E-6 : f32
    %23 = vector.broadcast %cst_8 : f32 to vector<16x1xf32>
    %24 = arith.addf %22, %23 : vector<16x1xf32>
    %25 = math.rsqrt %24 : vector<16x1xf32>
    %26 = vector.broadcast %25 : vector<16x1xf32> to vector<16x32xf32>
    %27 = arith.mulf %17, %26 : vector<16x32xf32>
    %28 = arith.truncf %27 : vector<16x32xf32> to vector<16x32xbf16>
    %c0_9 = arith.constant 0 : index
    %c0_10 = arith.constant 0 : index
    %29 = vector.load %arg5[%c0_9, %c0_10] : memref<32x32xbf16, #tpu.memory_space<vmem>>, vector<32x32xbf16>
    %cst_11 = arith.constant dense<0.000000e+00> : vector<16x32xf32>
    %30 = tpu.matmul %28, %29, %cst_11 {dimension_numbers = #tpu.dot_dimension_numbers<[1], [0], [0], [1], [0, 0, 1, 1], [], []>} : vector<16x32xbf16>, vector<32x32xbf16>, vector<16x32xf32> -> vector<16x32xf32>
    %c0_12 = arith.constant 0 : index
    %c0_13 = arith.constant 0 : index
    %31 = vector.load %arg6[%c0_12, %c0_13] : memref<1x32xf32, #tpu.memory_space<vmem>>, vector<1x32xf32>
    %32 = vector.broadcast %31 : vector<1x32xf32> to vector<16x32xf32>
    %33 = arith.addf %30, %32 : vector<16x32xf32>
    %c0_14 = arith.constant 0 : index
    %c0_15 = arith.constant 0 : index
    %34 = vector.load %arg3[%c0_14, %c0_15] : memref<16x1xi32, #tpu.memory_space<vmem>>, vector<16x1xi32>
    %35 = tpu.iota {dimensions = array<i32: 1>} : vector<16x16xi32>
    %36 = vector.broadcast %34 : vector<16x1xi32> to vector<16x16xi32>
    %37 = arith.cmpi eq, %35, %36 : vector<16x16xi32>
    %38 = arith.extui %37 : vector<16x16xi1> to vector<16x16xi32>
    %39 = arith.sitofp %38 : vector<16x16xi32> to vector<16x16xf32>
    %c0_16 = arith.constant 0 : index
    %c0_17 = arith.constant 0 : index
    %40 = vector.load %arg7[%c0_16, %c0_17] : memref<16x32xf32, #tpu.memory_space<vmem>>, vector<16x32xf32>
    %cst_18 = arith.constant dense<0.000000e+00> : vector<16x32xf32>
    %41 = tpu.matmul %39, %40, %cst_18 {dimension_numbers = #tpu.dot_dimension_numbers<[1], [0], [0], [1], [0, 0, 1, 1], [], []>} : vector<16x16xf32>, vector<16x32xf32>, vector<16x32xf32> -> vector<16x32xf32>
    %42 = arith.addf %33, %41 : vector<16x32xf32>
    %cst_19 = arith.constant dense<0.000000e+00> : vector<16xf32>
    %43 = vector.multi_reduction <add>, %42, %cst_19 [1] : vector<16x32xf32> to vector<16xf32>
    %44 = vector.shape_cast %43 : vector<16xf32> to vector<16x1xf32>
    %cst_20 = arith.constant 3.200000e+01 : f32
    %45 = vector.broadcast %cst_20 : f32 to vector<16x1xf32>
    %46 = arith.divf %44, %45 : vector<16x1xf32>
    %47 = vector.broadcast %46 : vector<16x1xf32> to vector<16x32xf32>
    %48 = arith.subf %42, %47 : vector<16x32xf32>
    %49 = arith.mulf %48, %48 : vector<16x32xf32>
    %cst_21 = arith.constant dense<0.000000e+00> : vector<16xf32>
    %50 = vector.multi_reduction <add>, %49, %cst_21 [1] : vector<16x32xf32> to vector<16xf32>
    %51 = vector.shape_cast %50 : vector<16xf32> to vector<16x1xf32>
    %cst_22 = arith.constant 3.200000e+01 : f32
    %52 = vector.broadcast %cst_22 : f32 to vector<16x1xf32>
    %53 = arith.divf %51, %52 : vector<16x1xf32>
    %cst_23 = arith.constant 9.99999974E-6 : f32
    %54 = vector.broadcast %cst_23 : f32 to vector<16x1xf32>
    %55 = arith.addf %53, %54 : vector<16x1xf32>
    %56 = math.rsqrt %55 : vector<16x1xf32>
    %57 = vector.broadcast %56 : vector<16x1xf32> to vector<16x32xf32>
    %58 = arith.mulf %48, %57 : vector<16x32xf32>
    %c0_24 = arith.constant 0 : index
    %c0_25 = arith.constant 0 : index
    %59 = vector.load %arg8[%c0_24, %c0_25] : memref<1x32xf32, #tpu.memory_space<vmem>>, vector<1x32xf32>
    %60 = vector.broadcast %59 : vector<1x32xf32> to vector<16x32xf32>
    %61 = arith.mulf %58, %60 : vector<16x32xf32>
    %c0_26 = arith.constant 0 : index
    %c0_27 = arith.constant 0 : index
    %62 = vector.load %arg9[%c0_26, %c0_27] : memref<1x32xf32, #tpu.memory_space<vmem>>, vector<1x32xf32>
    %63 = vector.broadcast %62 : vector<1x32xf32> to vector<16x32xf32>
    %64 = arith.addf %61, %63 : vector<16x32xf32>
    %c0_28 = arith.constant 0 : index
    %c0_29 = arith.constant 0 : index
    %65 = vector.load %arg10[%c0_28, %c0_29] : memref<16x32xf32, #tpu.memory_space<vmem>>, vector<16x32xf32>
    tpu.vector_store %arg10[%c0_28, %c0_29], %64 {strides = array<i32>} : memref<16x32xf32, #tpu.memory_space<vmem>>, vector<16x32xf32>,
    return
  }
  func.func @transform_0(%arg0: i32) -> (i32, i32) {
    %c0_i32 = arith.constant 0 : i32
    %c0_i32_0 = arith.constant 0 : i32
    return %arg0, %c0_i32 : i32, i32
  }
  func.func @transform_1(%arg0: i32) -> (i32, i32) {
    %c0_i32 = arith.constant 0 : i32
    %c0_i32_0 = arith.constant 0 : i32
    return %arg0, %c0_i32 : i32, i32
  }
  func.func @transform_2(%arg0: i32) -> (i32, i32) {
    %c0_i32 = arith.constant 0 : i32
    %c0_i32_0 = arith.constant 0 : i32
    return %arg0, %c0_i32 : i32, i32
  }
  func.func @transform_3(%arg0: i32) -> (i32, i32) {
    %c0_i32 = arith.constant 0 : i32
    %c0_i32_0 = arith.constant 0 : i32
    %c0_i32_1 = arith.constant 0 : i32
    return %c0_i32, %c0_i32_0 : i32, i32
  }
  func.func @transform_4(%arg0: i32) -> (i32, i32) {
    %c0_i32 = arith.constant 0 : i32
    %c0_i32_0 = arith.constant 0 : i32
    %c0_i32_1 = arith.constant 0 : i32
    return %c0_i32, %c0_i32_0 : i32, i32
  }
  func.func @transform_5(%arg0: i32) -> (i32, i32) {
    %c0_i32 = arith.constant 0 : i32
    %c0_i32_0 = arith.constant 0 : i32
    %c0_i32_1 = arith.constant 0 : i32
    return %c0_i32, %c0_i32_0 : i32, i32
  }
  func.func @transform_6(%arg0: i32) -> (i32, i32) {
    %c0_i32 = arith.constant 0 : i32
    %c0_i32_0 = arith.constant 0 : i32
    %c0_i32_1 = arith.constant 0 : i32
    return %c0_i32, %c0_i32_0 : i32, i32
  }
  func.func @transform_7(%arg0: i32) -> (i32, i32) {
    %c0_i32 = arith.constant 0 : i32
    %c0_i32_0 = arith.constant 0 : i32
    %c0_i32_1 = arith.constant 0 : i32
    return %c0_i32, %c0_i32_0 : i32, i32
  }
  func.func @transform_8(%arg0: i32) -> (i32, i32) {
    %c0_i32 = arith.constant 0 : i32
    %c0_i32_0 = arith.constant 0 : i32
    %c0_i32_1 = arith.constant 0 : i32
    return %c0_i32, %c0_i32_0 : i32, i32
  }
  func.func @transform_9(%arg0: i32) -> (i32, i32) {
    %c0_i32 = arith.constant 0 : i32
    %c0_i32_0 = arith.constant 0 : i32
    return %arg0, %c0_i32 : i32, i32
  }
}

module attributes {stable_mosaic.version = 11 : i64} {
  func.func @_image_embeddings_kernel(%arg0: i32, %arg1: memref<16x32xf32, #tpu.memory_space<vmem>>, %arg2: memref<16x1xf32, #tpu.memory_space<vmem>>, %arg3: memref<16x1xi32, #tpu.memory_space<vmem>>, %arg4: memref<2x32xf32, #tpu.memory_space<vmem>>, %arg5: memref<32x32xbf16, #tpu.memory_space<vmem>>, %arg6: memref<1x32xf32, #tpu.memory_space<vmem>>, %arg7: memref<16x32xf32, #tpu.memory_space<vmem>>, %arg8: memref<1x32xf32, #tpu.memory_space<vmem>>, %arg9: memref<1x32xf32, #tpu.memory_space<vmem>>, %arg10: memref<16x32xf32, #tpu.memory_space<vmem>>) attributes {dimension_semantics = [#tpu.dimension_semantics<parallel>], iteration_bounds = array<i64: 1>, scalar_prefetch = 0 : i64, scratch_operands = 0 : i64, tpu.core_type = #tpu.core_type<tc>, window_params = [{transform_indices = @transform_0, window_bounds = array<i64: 16, 32>}, {transform_indices = @transform_1, window_bounds = array<i64: 16, 1>}, {transform_indices = @transform_2, window_bounds = array<i64: 16, 1>}, {pipeline_mode = #tpu.pipeline_mode<synchronous>, transform_indices = @transform_3, window_bounds = array<i64: 2, 32>}, {pipeline_mode = #tpu.pipeline_mode<synchronous>, transform_indices = @transform_4, window_bounds = array<i64: 32, 32>}, {pipeline_mode = #tpu.pipeline_mode<synchronous>, transform_indices = @transform_5, window_bounds = array<i64: 1, 32>}, {pipeline_mode = #tpu.pipeline_mode<synchronous>, transform_indices = @transform_6, window_bounds = array<i64: 16, 32>}, {pipeline_mode = #tpu.pipeline_mode<synchronous>, transform_indices = @transform_7, window_bounds = array<i64: 1, 32>}, {pipeline_mode = #tpu.pipeline_mode<synchronous>, transform_indices = @transform_8, window_bounds = array<i64: 1, 32>}, {transform_indices = @transform_9, window_bounds = array<i64: 16, 32>}]} {
    %c0 = arith.constant 0 : index
    %c0_0 = arith.constant 0 : index
    %0 = vector.load %arg1[%c0, %c0_0] : memref<16x32xf32, #tpu.memory_space<vmem>>, vector<16x32xf32>
    %c0_1 = arith.constant 0 : index
    %c0_2 = arith.constant 0 : index
    %1 = vector.load %arg4[%c0_1, %c0_2] : memref<2x32xf32, #tpu.memory_space<vmem>>, vector<2x32xf32>
    %2 = vector.extract_strided_slice %1 {offsets = [0, 0], sizes = [1, 32], strides = [1, 1]} : vector<2x32xf32> to vector<1x32xf32>
    %3 = vector.extract_strided_slice %1 {offsets = [1, 0], sizes = [1, 32], strides = [1, 1]} : vector<2x32xf32> to vector<1x32xf32>
    %4 = arith.subf %3, %2 : vector<1x32xf32>
    %c0_3 = arith.constant 0 : index
    %c0_4 = arith.constant 0 : index
    %5 = vector.load %arg2[%c0_3, %c0_4] : memref<16x1xf32, #tpu.memory_space<vmem>>, vector<16x1xf32>
    %6 = vector.broadcast %2 : vector<1x32xf32> to vector<16x32xf32>
    %7 = arith.addf %0, %6 : vector<16x32xf32>
    %8 = vector.broadcast %5 : vector<16x1xf32> to vector<16x32xf32>
    %9 = vector.broadcast %4 : vector<1x32xf32> to vector<16x32xf32>
    %10 = arith.mulf %8, %9 : vector<16x32xf32>
    %11 = arith.addf %7, %10 : vector<16x32xf32>
    %cst = arith.constant dense<0.000000e+00> : vector<16xf32>
    %12 = vector.multi_reduction <add>, %11, %cst [1] : vector<16x32xf32> to vector<16xf32>
    %13 = vector.shape_cast %12 : vector<16xf32> to vector<16x1xf32>
    %cst_5 = arith.constant 3.200000e+01 : f32
    %14 = vector.broadcast %cst_5 : f32 to vector<16x1xf32>
    %15 = arith.divf %13, %14 : vector<16x1xf32>
    %16 = vector.broadcast %15 : vector<16x1xf32> to vector<16x32xf32>
    %17 = arith.subf %11, %16 : vector<16x32xf32>
    %18 = arith.mulf %17, %17 : vector<16x32xf32>
    %cst_6 = arith.constant dense<0.000000e+00> : vector<16xf32>
    %19 = vector.multi_reduction <add>, %18, %cst_6 [1] : vector<16x32xf32> to vector<16xf32>
    %20 = vector.shape_cast %19 : vector<16xf32> to vector<16x1xf32>
    %cst_7 = arith.constant 3.200000e+01 : f32
    %21 = vector.broadcast %cst_7 : f32 to vector<16x1xf32>
    %22 = arith.divf %20, %21 : vector<16x1xf32>
    %cst_8 = arith.constant 9.99999974E-6 : f32
    %23 = vector.broadcast %cst_8 : f32 to vector<16x1xf32>
    %24 = arith.addf %22, %23 : vector<16x1xf32>
    %25 = math.rsqrt %24 : vector<16x1xf32>
    %26 = vector.broadcast %25 : vector<16x1xf32> to vector<16x32xf32>
    %27 = arith.mulf %17, %26 : vector<16x32xf32>
    %28 = arith.truncf %27 : vector<16x32xf32> to vector<16x32xbf16>
    %c0_9 = arith.constant 0 : index
    %c0_10 = arith.constant 0 : index
    %29 = vector.load %arg5[%c0_9, %c0_10] : memref<32x32xbf16, #tpu.memory_space<vmem>>, vector<32x32xbf16>
    %cst_11 = arith.constant dense<0.000000e+00> : vector<16x32xf32>
    %30 = tpu.matmul %28, %29, %cst_11 {dimension_numbers = #tpu.dot_dimension_numbers<[1], [0], [0], [1], [0, 0, 1, 1], [], []>} : vector<16x32xbf16>, vector<32x32xbf16>, vector<16x32xf32> -> vector<16x32xf32>
    %c0_12 = arith.constant 0 : index
    %c0_13 = arith.constant 0 : index
    %31 = vector.load %arg6[%c0_12, %c0_13] : memref<1x32xf32, #tpu.memory_space<vmem>>, vector<1x32xf32>
    %32 = vector.broadcast %31 : vector<1x32xf32> to vector<16x32xf32>
    %33 = arith.addf %30, %32 : vector<16x32xf32>
    %c0_14 = arith.constant 0 : index
    %c0_15 = arith.constant 0 : index
    %34 = vector.load %arg3[%c0_14, %c0_15] : memref<16x1xi32, #tpu.memory_space<vmem>>, vector<16x1xi32>
    %35 = tpu.iota {dimensions = array<i32: 1>} : vector<16x16xi32>
    %36 = vector.broadcast %34 : vector<16x1xi32> to vector<16x16xi32>
    %37 = arith.cmpi eq, %35, %36 : vector<16x16xi32>
    %38 = arith.extui %37 : vector<16x16xi1> to vector<16x16xi32>
    %39 = arith.sitofp %38 : vector<16x16xi32> to vector<16x16xf32>
    %c0_16 = arith.constant 0 : index
    %c0_17 = arith.constant 0 : index
    %40 = vector.load %arg7[%c0_16, %c0_17] : memref<16x32xf32, #tpu.memory_space<vmem>>, vector<16x32xf32>
    %cst_18 = arith.constant dense<0.000000e+00> : vector<16x32xf32>
    %41 = tpu.matmul %39, %40, %cst_18 {dimension_numbers = #tpu.dot_dimension_numbers<[1], [0], [0], [1], [0, 0, 1, 1], [], []>} : vector<16x16xf32>, vector<16x32xf32>, vector<16x32xf32> -> vector<16x32xf32>
    %42 = arith.addf %33, %41 : vector<16x32xf32>
    %cst_19 = arith.constant dense<0.000000e+00> : vector<16xf32>
    %43 = vector.multi_reduction <add>, %42, %cst_19 [1] : vector<16x32xf32> to vector<16xf32>
    %44 = vector.shape_cast %43 : vector<16xf32> to vector<16x1xf32>
    %cst_20 = arith.constant 3.200000e+01 : f32
    %45 = vector.broadcast %cst_20 : f32 to vector<16x1xf32>
    %46 = arith.divf %44, %45 : vector<16x1xf32>
    %47 = vector.broadcast %46 : vector<16x1xf32> to vector<16x32xf32>
    %48 = arith.subf %42, %47 : vector<16x32xf32>
    %49 = arith.mulf %48, %48 : vector<16x32xf32>
    %cst_21 = arith.constant dense<0.000000e+00> : vector<16xf32>
    %50 = vector.multi_reduction <add>, %49, %cst_21 [1] : vector<16x32xf32> to vector<16xf32>
    %51 = vector.shape_cast %50 : vector<16xf32> to vector<16x1xf32>
    %cst_22 = arith.constant 3.200000e+01 : f32
    %52 = vector.broadcast %cst_22 : f32 to vector<16x1xf32>
    %53 = arith.divf %51, %52 : vector<16x1xf32>
    %cst_23 = arith.constant 9.99999974E-6 : f32
    %54 = vector.broadcast %cst_23 : f32 to vector<16x1xf32>
    %55 = arith.addf %53, %54 : vector<16x1xf32>
    %56 = math.rsqrt %55 : vector<16x1xf32>
    %57 = vector.broadcast %56 : vector<16x1xf32> to vector<16x32xf32>
    %58 = arith.mulf %48, %57 : vector<16x32xf32>
    %c0_24 = arith.constant 0 : index
    %c0_25 = arith.constant 0 : index
    %59 = vector.load %arg8[%c0_24, %c0_25] : memref<1x32xf32, #tpu.memory_space<vmem>>, vector<1x32xf32>
    %60 = vector.broadcast %59 : vector<1x32xf32> to vector<16x32xf32>
    %61 = arith.mulf %58, %60 : vector<16x32xf32>
    %c0_26 = arith.constant 0 : index
    %c0_27 = arith.constant 0 : index
    %62 = vector.load %arg9[%c0_26, %c0_27] : memref<1x32xf32, #tpu.memory_space<vmem>>, vector<1x32xf32>
    %63 = vector.broadcast %62 : vector<1x32xf32> to vector<16x32xf32>
    %64 = arith.addf %61, %63 : vector<16x32xf32>
    %c0_28 = arith.constant 0 : index
    %c0_29 = arith.constant 0 : index
    %65 = vector.load %arg10[%c0_28, %c0_29] : memref<16x32xf32, #tpu.memory_space<vmem>>, vector<16x32xf32>
    tpu.vector_store %arg10[%c0_28, %c0_29], %64 {strides = array<i32>} : memref<16x32xf32, #tpu.memory_space<vmem>>, vector<16x32xf32>,
    return
  }
  func.func @transform_0(%arg0: i32) -> (i32, i32) {
    %c0_i32 = arith.constant 0 : i32
    %c0_i32_0 = arith.constant 0 : i32
    return %arg0, %c0_i32 : i32, i32
  }
  func.func @transform_1(%arg0: i32) -> (i32, i32) {
    %c0_i32 = arith.constant 0 : i32
    %c0_i32_0 = arith.constant 0 : i32
    return %arg0, %c0_i32 : i32, i32
  }
  func.func @transform_2(%arg0: i32) -> (i32, i32) {
    %c0_i32 = arith.constant 0 : i32
    %c0_i32_0 = arith.constant 0 : i32
    return %arg0, %c0_i32 : i32, i32
  }
  func.func @transform_3(%arg0: i32) -> (i32, i32) {
    %c0_i32 = arith.constant 0 : i32
    %c0_i32_0 = arith.constant 0 : i32
    %c0_i32_1 = arith.constant 0 : i32
    return %c0_i32, %c0_i32_0 : i32, i32
  }
  func.func @transform_4(%arg0: i32) -> (i32, i32) {
    %c0_i32 = arith.constant 0 : i32
    %c0_i32_0 = arith.constant 0 : i32
    %c0_i32_1 = arith.constant 0 : i32
    return %c0_i32, %c0_i32_0 : i32, i32
  }
  func.func @transform_5(%arg0: i32) -> (i32, i32) {
    %c0_i32 = arith.constant 0 : i32
    %c0_i32_0 = arith.constant 0 : i32
    %c0_i32_1 = arith.constant 0 : i32
    return %c0_i32, %c0_i32_0 : i32, i32
  }
  func.func @transform_6(%arg0: i32) -> (i32, i32) {
    %c0_i32 = arith.constant 0 : i32
    %c0_i32_0 = arith.constant 0 : i32
    %c0_i32_1 = arith.constant 0 : i32
    return %c0_i32, %c0_i32_0 : i32, i32
  }
  func.func @transform_7(%arg0: i32) -> (i32, i32) {
    %c0_i32 = arith.constant 0 : i32
    %c0_i32_0 = arith.constant 0 : i32
    %c0_i32_1 = arith.constant 0 : i32
    return %c0_i32, %c0_i32_0 : i32, i32
  }
  func.func @transform_8(%arg0: i32) -> (i32, i32) {
    %c0_i32 = arith.constant 0 : i32
    %c0_i32_0 = arith.constant 0 : i32
    %c0_i32_1 = arith.constant 0 : i32
    return %c0_i32, %c0_i32_0 : i32, i32
  }
  func.func @transform_9(%arg0: i32) -> (i32, i32) {
    %c0_i32 = arith.constant 0 : i32
    %c0_i32_0 = arith.constant 0 : i32
    return %arg0, %c0_i32 : i32, i32
  }
}

</mosaic_0001>

<llo_original>
// kernel: tpu_custom_call.1
$region0: #{tpu_custom_call.1}
  #allocation0 [shape = 'u32[]', space=smem, size = 0x4, offset = 0x4, fixed_abs, tag = 'smem constant byte address 0x4 - core index']
  #allocation1 [shape = 'u32[144,128]{1,0:T(1,128)}', space=vmem, size = 0x12000, scoped, tag = 'internal scratch']
  %s0 = inlined_call_operand.vmem [shape: f32[16,32], index: 0, kind: input, shape index: {}]
  %s1 = inlined_call_operand.vmem [shape: f32[16,1], index: 1, kind: input, shape index: {}]
  %s2 = inlined_call_operand.vmem [shape: s32[16,1], index: 2, kind: input, shape index: {}]
  %s3 = inlined_call_operand.hbm [shape: f32[2,32], index: 3, kind: input, shape index: {}]
  %s4 = inlined_call_operand.vmem [shape: bf16[32,32], index: 4, kind: input, shape index: {}]
  %s5 = inlined_call_operand.vmem [shape: f32[1,32], index: 5, kind: input, shape index: {}]
  %s6 = inlined_call_operand.vmem [shape: f32[16,32], index: 6, kind: input, shape index: {}]
  %s7 = inlined_call_operand.vmem [shape: f32[1,32], index: 7, kind: input, shape index: {}]
  %s8 = inlined_call_operand.vmem [shape: f32[1,32], index: 8, kind: input, shape index: {}]
  %s9 = inlined_call_operand.hbm [shape: f32[16,32], index: 9, kind: output, shape index: {}]
  %s10 = sld [smem:[#allocation0]]
  $region50: #{tpu_custom_call.1} parent=0
    _
  %s12 = ssub.s32 1, %s10
  %s13 = scalar_select 0, %s12, %s10
  $region1: #{tpu_custom_call.1} parent=0
    #allocation2 [shape = 'u8[1024]{0}', space=vmem, size = 0x400, scoped, tag = 'input window, operand 3, single buffered']
    #allocation3 [shape = 's32[1]{0}', space=sflag, size = 0x4, scoped, tag = 'scoped memory for tpu_custom_call.1']
    #allocation4 [shape = 's32[1]{0}', space=sflag, size = 0x4, scoped, tag = 'scoped memory for tpu_custom_call.1']
    #allocation5 [shape = 'u8[8192]{0}', space=vmem, size = 0x2000, scoped, tag = 'output window, operand 0, single buffered']
    %14 = vsyncpa [#allocation3], 0
    %15 = vsyncpa [#allocation4], 0
    // Predicated region
    $region2: #{tpu_custom_call.1} parent=1 // pred_check
      _
    $region3: #{tpu_custom_call.1} parent=1 // pred_check_branch
      %17 = sbr.rel (0) target = $region5
    $region4: #{tpu_custom_call.1} parent=1 // pred_region
      _
    $region5: #{tpu_custom_call.1} parent=1 // pred_fallthru
      _
    // Predicated region
    $region6: #{tpu_custom_call.1} parent=1 // pred_check
      _
    $region7: #{tpu_custom_call.1} parent=1 // pred_check_branch
      %19 = sbr.rel (0) target = $region9
    $region8: #{tpu_custom_call.1} parent=1 // pred_region
      _
    $region9: #{tpu_custom_call.1} parent=1 // pred_fallthru
      _
    // Predicated region
    $region10: #{tpu_custom_call.1} parent=1 // pred_check
      _
    $region11: #{tpu_custom_call.1} parent=1 // pred_check_branch
      %21 = sbr.rel (0) target = $region13
    $region12: #{tpu_custom_call.1} parent=1 // pred_region
      _
    $region13: #{tpu_custom_call.1} parent=1 // pred_fallthru
      _
    // Predicated region
    $region14: #{tpu_custom_call.1} parent=1 // pred_check
      _
    $region15: #{tpu_custom_call.1} parent=1 // pred_check_branch
      %23 = sbr.rel (0) target = $region17
    $region16: #{tpu_custom_call.1} parent=1 // pred_region
      %s25 = ssub.s32 32, 32
      %26 = vsyncadd [#allocation3], %s25
      %s28 = sshll.u32 [#allocation2], 4
      %s29 = int_to_ptr.vmem [resolvable:$true] %s28
      %31 = dma.hbm_to_vmem [thread:$0]  %s3, 32, %s29, [#allocation3]
    $region17: #{tpu_custom_call.1} parent=1 // pred_fallthru
      _
    // Predicated region
    $region18: #{tpu_custom_call.1} parent=1 // pred_check
      _
    $region19: #{tpu_custom_call.1} parent=1 // pred_check_branch
      %33 = sbr.rel (0) target = $region21
    $region20: #{tpu_custom_call.1} parent=1 // pred_region
      _
    $region21: #{tpu_custom_call.1} parent=1 // pred_fallthru
      _
    // Predicated region
    $region22: #{tpu_custom_call.1} parent=1 // pred_check
      _
    $region23: #{tpu_custom_call.1} parent=1 // pred_check_branch
      %35 = sbr.rel (0) target = $region25
    $region24: #{tpu_custom_call.1} parent=1 // pred_region
      _
    $region25: #{tpu_custom_call.1} parent=1 // pred_fallthru
      _
    // Predicated region
    $region26: #{tpu_custom_call.1} parent=1 // pred_check
      _
    $region27: #{tpu_custom_call.1} parent=1 // pred_check_branch
      %37 = sbr.rel (0) target = $region29
    $region28: #{tpu_custom_call.1} parent=1 // pred_region
      _
    $region29: #{tpu_custom_call.1} parent=1 // pred_fallthru
      _
    // Predicated region
    $region30: #{tpu_custom_call.1} parent=1 // pred_check
      _
    $region31: #{tpu_custom_call.1} parent=1 // pred_check_branch
      %39 = sbr.rel (0) target = $region33
    $region32: #{tpu_custom_call.1} parent=1 // pred_region
      _
    $region33: #{tpu_custom_call.1} parent=1 // pred_fallthru
      _
    // Predicated region
    $region34: #{tpu_custom_call.1} parent=1 // pred_check
      _
    $region35: #{tpu_custom_call.1} parent=1 // pred_check_branch
      %41 = sbr.rel (0) target = $region37
    $region36: #{tpu_custom_call.1} parent=1 // pred_region
      _
    $region37: #{tpu_custom_call.1} parent=1 // pred_fallthru
      _
    // Predicated region
    $region38: #{tpu_custom_call.1} parent=1 // pred_check
      _
    $region39: #{tpu_custom_call.1} parent=1 // pred_check_branch
      %43 = sbr.rel (0) target = $region41
    $region40: #{tpu_custom_call.1} parent=1 // pred_region
      %44 = dma.done [#allocation3], 32
    $region41: #{tpu_custom_call.1} parent=1 // pred_fallthru
      _
    %v46 = vld [vmem:[%s0] sm:$0xff]
    %v47 = vld [vmem:[%s0 + $0x8] sm:$0xff]
    %v48 = vld [vmem:[#allocation2] sm:$0x3]
    %v50 = vrot.slane %v48, 7
    %v52 = vsub.f32 %v48, %v50
    %v53 = vld [vmem:[%s1] sm:$0xff]
    %v54 = vld [vmem:[%s1 + $0x8] sm:$0xff]
    %v55 = vlaneseq
    %v56 = vshrl.u32 %v55, 7
    %v57 = vsub.s32 0, %v56
    %v58 = vrot.slane %v48, %v57
    %v59 = vadd.f32 %v46, %v58
    %v60 = vadd.f32 %v47, %v58
    %62 = vset.pattern.permute.xlu0 0
    %63 = vperm.xlu0 %62, %v53
    %v64 = vpop.permute.xlu0 %63
    %67 = vset.pattern.permute.xlu0 0
    %68 = vperm.xlu0 %67, %v54
    %v69 = vpop.permute.xlu0 %68
    %v71 = vlaneseq
    %v72 = vshrl.u32 %v71, 7
    %v73 = vsub.s32 1, %v72
    %v74 = vrot.slane %v52, %v73
    %v75 = vmul.f32 %v64, %v74
    %v76 = vmul.f32 %v69, %v74
    %v77 = vadd.f32 %v59, %v75
    %v78 = vadd.f32 %v60, %v76
    %vm79 = vcmask 261120
    %v80 = vsel %vm79, %v77, 0.0
    %81 = vadd.xlane.f32.xlu0 %v80
    %v82 = vpop.xlane.xlu0 %81
    %v83 = vsel %vm79, %v78, 0.0
    %84 = vadd.xlane.f32.xlu0 %v83
    %v85 = vpop.xlane.xlu0 %84
    %v86 = vrcp.pop 32.0
    %v87 = vmul.f32 %v82, %v86
    %v88 = vmul.f32 %v85, %v86
    %v89 = vsub.f32 %v77, %v87
    %v90 = vsub.f32 %v78, %v88
    %v91 = vmul.f32 %v89, %v89
    %v92 = vmul.f32 %v90, %v90
    %v93 = vsel %vm79, %v91, 0.0
    %94 = vadd.xlane.f32.xlu0 %v93
    %v95 = vpop.xlane.xlu0 %94
    %v96 = vsel %vm79, %v92, 0.0
    %97 = vadd.xlane.f32.xlu0 %v96
    %v98 = vpop.xlane.xlu0 %97
    %v99 = vmul.f32 %v95, %v86
    %v100 = vmul.f32 %v98, %v86
    %v101 = vadd.f32 %v99, 1e-05
    %v102 = vadd.f32 %v100, 1e-05
    %v103 = vrsqrt.pop %v101
    %v104 = vrsqrt.pop %v102
    %v105 = vmul.f32 %v89, %v103
    %v106 = vmul.f32 %v90, %v104
    %v107 = vpack.c.bf16 %v106, %v105
    %v108 = vld [vmem:[%s4] sm:$0xf]
    %v109 = vld [vmem:[%s4 + $0x4] sm:$0xf]
    %v110 = vld [vmem:[%s4 + $0x8] sm:$0xf]
    %v111 = vld [vmem:[%s4 + $0xc] sm:$0xf]
    %v112 = vld [vmem:[%s5] sm:$0x1]
    %v114 = vlaneseq
    %v115 = vshrl.u32 %v114, 7
    %v116 = vsub.s32 0, %v115
    %v117 = vrot.slane %v112, %v116
    %v123 = vunpack.c.l.b16 %v108
    %v124 = vunpack.c.l.b16 %v109
    %v125 = vunpack.c.l.b16 %v110
    %v126 = vunpack.c.l.b16 %v111
    %v127 = vpack.c.b16 %v124, %v123
    %v128 = vpack.c.b16 %v126, %v125
    %v132 = vsel %vm79, %v107, 0
    %134 = vmatprep.subr.bf16.mxu0 0
    %135 = vmatpush1.bf16.msra.mxu0 %v127
    %136 = vmatprep.subr.bf16.mxu0 0
    %137 = vmatpush1.bf16.msra.mxu0 %v128
    %138 = vmatprep.subr.bf16.mxu0 0
    %139 = vmatpush1.bf16.msra.mxu0 0
    %140 = vmatprep.subr.bf16.mxu0 0
    %141 = vmatpush1.bf16.msra.mxu0 0
    %142 = vmatprep.subr.bf16.mxu0 0
    %143 = vmatpush1.bf16.msra.mxu0 0
    %144 = vmatprep.subr.bf16.mxu0 0
    %145 = vmatpush1.bf16.msra.mxu0 0
    %146 = vmatprep.subr.bf16.mxu0 0
    %147 = vmatpush1.bf16.msra.mxu0 0
    %148 = vmatprep.subr.bf16.mxu0 0
    %149 = vmatpush1.bf16.msra.mxu0 0
    %150 = vmatprep.subr.bf16.mxu0 0
    %151 = vmatpush1.bf16.msra.mxu0 0
    %152 = vmatprep.subr.bf16.mxu0 0
    %153 = vmatpush1.bf16.msra.mxu0 0
    %154 = vmatprep.subr.bf16.mxu0 0
    %155 = vmatpush1.bf16.msra.mxu0 0
    %156 = vmatprep.subr.bf16.mxu0 0
    %157 = vmatpush1.bf16.msra.mxu0 0
    %158 = vmatprep.subr.bf16.mxu0 0
    %159 = vmatpush1.bf16.msra.mxu0 0
    %160 = vmatprep.subr.bf16.mxu0 0
    %161 = vmatpush1.bf16.msra.mxu0 0
    %162 = vmatprep.subr.bf16.mxu0 0
    %163 = vmatpush1.bf16.msra.mxu0 0
    %164 = vmatprep.subr.bf16.mxu0 0
    %165 = vmatpush1.bf16.msra.mxu0 0
    %166 = vmatprep.mubr.bf16.mxu0 0
    %167 = vmatmul.mubr.bf16.gmra.mrb[0].mxu0 %v132
    %v168 = vpop.f32.mrb[0].mxu0
    %v169 = vadd.f32 %v117, %v168
    %v170 = vpop.f32.mrb[0].mxu0
    %v171 = vpop.f32.mrb[0].mxu0
    %v172 = vadd.f32 %v117, %v171
    %v173 = vpop.f32.mrb[0].mxu0
    %174 = vdwg.mxu0
    %v175 = vld [vmem:[%s2] sm:$0xff]
    %v176 = vld [vmem:[%s2 + $0x8] sm:$0xff]
    %v177 = vlaneseq
    %v178 = vand.u32 %v177, 127
    %179 = vset.pattern.permute.xlu0 0
    %180 = vperm.xlu0 %179, %v175
    %v181 = vpop.permute.xlu0 %180
    %182 = vset.pattern.permute.xlu0 0
    %183 = vperm.xlu0 %182, %v176
    %v184 = vpop.permute.xlu0 %183
    %vm185 = vcmp.eq.s32.totalorder %v178, %v181
    %vm186 = vcmp.eq.s32.totalorder %v178, %v184
    %v187 = vsel %vm185, 1, 0
    %v188 = vsel %vm186, 1, 0
    %v189 = vcvt.s32.f32 %v187
    %v190 = vcvt.s32.f32 %v188
    %v191 = vld [vmem:[%s6] sm:$0xff]
    %v192 = vld [vmem:[%s6 + $0x8] sm:$0xff]
    %vm193 = vcmask 130048
    %v195 = vsel %vm193, %v189, 0
    %v198 = vsel %vm193, %v190, 0
    %200 = vmatprep.subr.mxu0 0.0
    %201 = vmatpush1.msra.mxu0 %v191
    %202 = vmatprep.subr.mxu0 0.0
    %203 = vmatpush1.msra.mxu0 %v192
    %204 = vmatprep.subr.mxu0 0.0
    %205 = vmatpush1.msra.mxu0 0.0
    %206 = vmatprep.subr.mxu0 0.0
    %207 = vmatpush1.msra.mxu0 0.0
    %208 = vmatprep.subr.mxu0 0.0
    %209 = vmatpush1.msra.mxu0 0.0
    %210 = vmatprep.subr.mxu0 0.0
    %211 = vmatpush1.msra.mxu0 0.0
    %212 = vmatprep.subr.mxu0 0.0
    %213 = vmatpush1.msra.mxu0 0.0
    %214 = vmatprep.subr.mxu0 0.0
    %215 = vmatpush1.msra.mxu0 0.0
    %216 = vmatprep.subr.mxu0 0.0
    %217 = vmatpush1.msra.mxu0 0.0
    %218 = vmatprep.subr.mxu0 0.0
    %219 = vmatpush1.msra.mxu0 0.0
    %220 = vmatprep.subr.mxu0 0.0
    %221 = vmatpush1.msra.mxu0 0.0
    %222 = vmatprep.subr.mxu0 0.0
    %223 = vmatpush1.msra.mxu0 0.0
    %224 = vmatprep.subr.mxu0 0.0
    %225 = vmatpush1.msra.mxu0 0.0
    %226 = vmatprep.subr.mxu0 0.0
    %227 = vmatpush1.msra.mxu0 0.0
    %228 = vmatprep.subr.mxu0 0.0
    %229 = vmatpush1.msra.mxu0 0.0
    %230 = vmatprep.subr.mxu0 0.0
    %231 = vmatpush1.msra.mxu0 0.0
    %232 = vmatprep.subr.mxu0 0.0
    %233 = vmatpush1.msra.mxu0 0.0
    %234 = vmatprep.subr.mxu0 0.0
    %235 = vmatpush1.msra.mxu0 0.0
    %236 = vmatprep.subr.mxu0 0.0
    %237 = vmatpush1.msra.mxu0 0.0
    %238 = vmatprep.subr.mxu0 0.0
    %239 = vmatpush1.msra.mxu0 0.0
    %240 = vmatprep.subr.mxu0 0.0
    %241 = vmatpush1.msra.mxu0 0.0
    %242 = vmatprep.subr.mxu0 0.0
    %243 = vmatpush1.msra.mxu0 0.0
    %244 = vmatprep.subr.mxu0 0.0
    %245 = vmatpush1.msra.mxu0 0.0
    %246 = vmatprep.subr.mxu0 0.0
    %247 = vmatpush1.msra.mxu0 0.0
    %248 = vmatprep.subr.mxu0 0.0
    %249 = vmatpush1.msra.mxu0 0.0
    %250 = vmatprep.subr.mxu0 0.0
    %251 = vmatpush1.msra.mxu0 0.0
    %252 = vmatprep.subr.mxu0 0.0
    %253 = vmatpush1.msra.mxu0 0.0
    %254 = vmatprep.subr.mxu0 0.0
    %255 = vmatpush1.msra.mxu0 0.0
    %256 = vmatprep.subr.mxu0 0.0
    %257 = vmatpush1.msra.mxu0 0.0
    %258 = vmatprep.subr.mxu0 0.0
    %259 = vmatpush1.msra.mxu0 0.0
    %260 = vmatprep.subr.mxu0 0.0
    %261 = vmatpush1.msra.mxu0 0.0
    %262 = vmatprep.subr.mxu0 0.0
    %263 = vmatpush1.msra.mxu0 0.0
    %264 = vmatprep.mubr.f32.mxu0 0.0
    %265 = vmatmul.mubr.f32.gmra.mrb[0].mxu0 %v195
    %v266 = vpop.f32.mrb[0].mxu0
    %v267 = vadd.f32 0.0, %v266
    %v268 = vpop.f32.mrb[0].mxu0
    %269 = vmatprep.mubr.f32.mxu0 0.0
    %270 = vmatmul.mubr.f32.gmra.mrb[0].mxu0 %v198
    %v271 = vpop.f32.mrb[0].mxu0
    %v272 = vadd.f32 0.0, %v271
    %v273 = vpop.f32.mrb[0].mxu0
    %274 = vdwg.mxu0
    %v275 = vadd.f32 %v169, %v267
    %v276 = vadd.f32 %v172, %v272
    %v277 = vsel %vm79, %v275, 0.0
    %278 = vadd.xlane.f32.xlu0 %v277
    %v279 = vpop.xlane.xlu0 %278
    %v280 = vsel %vm79, %v276, 0.0
    %281 = vadd.xlane.f32.xlu0 %v280
    %v282 = vpop.xlane.xlu0 %281
    %v283 = vmul.f32 %v279, %v86
    %v284 = vmul.f32 %v282, %v86
    %v285 = vsub.f32 %v275, %v283
    %v286 = vsub.f32 %v276, %v284
    %v287 = vmul.f32 %v285, %v285
    %v288 = vmul.f32 %v286, %v286
    %v289 = vsel %vm79, %v287, 0.0
    %290 = vadd.xlane.f32.xlu0 %v289
    %v291 = vpop.xlane.xlu0 %290
    %v292 = vsel %vm79, %v288, 0.0
    %293 = vadd.xlane.f32.xlu0 %v292
    %v294 = vpop.xlane.xlu0 %293
    %v295 = vmul.f32 %v291, %v86
    %v296 = vmul.f32 %v294, %v86
    %v297 = vadd.f32 %v295, 1e-05
    %v298 = vadd.f32 %v296, 1e-05
    %v299 = vrsqrt.pop %v297
    %v300 = vrsqrt.pop %v298
    %v301 = vmul.f32 %v285, %v299
    %v302 = vmul.f32 %v286, %v300
    %v303 = vld [vmem:[%s7] sm:$0x1]
    %v305 = vlaneseq
    %v306 = vshrl.u32 %v305, 7
    %v307 = vsub.s32 0, %v306
    %v308 = vrot.slane %v303, %v307
    %v310 = vmul.f32 %v301, %v308
    %v311 = vmul.f32 %v302, %v308
    %v312 = vld [vmem:[%s8] sm:$0x1]
    %v314 = vlaneseq
    %v315 = vshrl.u32 %v314, 7
    %v316 = vsub.s32 0, %v315
    %v317 = vrot.slane %v312, %v316
    %v319 = vadd.f32 %v310, %v317
    %v320 = vadd.f32 %v311, %v317
    %321 = vst.msk [vmem:[#allocation5] sm:$0xff] %vm79, %v319
    %322 = vst.msk [vmem:[#allocation5 + $0x8] sm:$0xff] %vm79, %v320
    // Predicated region
    $region42: #{tpu_custom_call.1} parent=1 // pred_check
      _
    $region43: #{tpu_custom_call.1} parent=1 // pred_check_branch
      %324 = sbr.rel (0) target = $region45
    $region44: #{tpu_custom_call.1} parent=1 // pred_region
      %s326 = ssub.s32 256, 256
      %327 = vsyncadd [#allocation4], %s326
      %s328 = sshll.u32 [#allocation5], 4
      %s329 = int_to_ptr.vmem [resolvable:$true] %s328
      %334 = dma.vmem_to_hbm [thread:$0]  %s329, 256, %s9, [#allocation4], 128, 128, 8
    $region45: #{tpu_custom_call.1} parent=1 // pred_fallthru
      _
    // Predicated region
    $region46: #{tpu_custom_call.1} parent=1 // pred_check
      _
    $region47: #{tpu_custom_call.1} parent=1 // pred_check_branch
      %336 = sbr.rel (0) target = $region49
    $region48: #{tpu_custom_call.1} parent=1 // pred_region
      %337 = dma.done [#allocation4], 256
    $region49: #{tpu_custom_call.1} parent=1 // pred_fallthru
      _
    %338 = vsyncpa [#allocation3], 1
    %339 = vsyncpa [#allocation4], 1

// kernel: tpu_custom_call.1
$region0: #{tpu_custom_call.1}
  #allocation0 [shape = 'u32[]', space=smem, size = 0x4, offset = 0x4, fixed_abs, tag = 'smem constant byte address 0x4 - core index']
  #allocation1 [shape = 'u32[144,128]{1,0:T(1,128)}', space=vmem, size = 0x12000, scoped, tag = 'internal scratch']
  %s0 = inlined_call_operand.vmem [shape: f32[16,32], index: 0, kind: input, shape index: {}]
  %s1 = inlined_call_operand.vmem [shape: f32[16,1], index: 1, kind: input, shape index: {}]
  %s2 = inlined_call_operand.vmem [shape: s32[16,1], index: 2, kind: input, shape index: {}]
  %s3 = inlined_call_operand.hbm [shape: f32[2,32], index: 3, kind: input, shape index: {}]
  %s4 = inlined_call_operand.vmem [shape: bf16[32,32], index: 4, kind: input, shape index: {}]
  %s5 = inlined_call_operand.vmem [shape: f32[1,32], index: 5, kind: input, shape index: {}]
  %s6 = inlined_call_operand.vmem [shape: f32[16,32], index: 6, kind: input, shape index: {}]
  %s7 = inlined_call_operand.vmem [shape: f32[1,32], index: 7, kind: input, shape index: {}]
  %s8 = inlined_call_operand.vmem [shape: f32[1,32], index: 8, kind: input, shape index: {}]
  %s9 = inlined_call_operand.hbm [shape: f32[16,32], index: 9, kind: output, shape index: {}]
  %s10 = sld [smem:[#allocation0]]
  $region50: #{tpu_custom_call.1} parent=0
    _
  %s12 = ssub.s32 1, %s10
  %s13 = scalar_select 0, %s12, %s10
  $region1: #{tpu_custom_call.1} parent=0
    #allocation2 [shape = 'u8[1024]{0}', space=vmem, size = 0x400, scoped, tag = 'input window, operand 3, single buffered']
    #allocation3 [shape = 's32[1]{0}', space=sflag, size = 0x4, scoped, tag = 'scoped memory for tpu_custom_call.1']
    #allocation4 [shape = 's32[1]{0}', space=sflag, size = 0x4, scoped, tag = 'scoped memory for tpu_custom_call.1']
    #allocation5 [shape = 'u8[8192]{0}', space=vmem, size = 0x2000, scoped, tag = 'output window, operand 0, single buffered']
    %14 = vsyncpa [#allocation3], 0
    %15 = vsyncpa [#allocation4], 0
    // Predicated region
    $region2: #{tpu_custom_call.1} parent=1 // pred_check
      _
    $region3: #{tpu_custom_call.1} parent=1 // pred_check_branch
      %17 = sbr.rel (0) target = $region5
    $region4: #{tpu_custom_call.1} parent=1 // pred_region
      _
    $region5: #{tpu_custom_call.1} parent=1 // pred_fallthru
      _
    // Predicated region
    $region6: #{tpu_custom_call.1} parent=1 // pred_check
      _
    $region7: #{tpu_custom_call.1} parent=1 // pred_check_branch
      %19 = sbr.rel (0) target = $region9
    $region8: #{tpu_custom_call.1} parent=1 // pred_region
      _
    $region9: #{tpu_custom_call.1} parent=1 // pred_fallthru
      _
    // Predicated region
    $region10: #{tpu_custom_call.1} parent=1 // pred_check
      _
    $region11: #{tpu_custom_call.1} parent=1 // pred_check_branch
      %21 = sbr.rel (0) target = $region13
    $region12: #{tpu_custom_call.1} parent=1 // pred_region
      _
    $region13: #{tpu_custom_call.1} parent=1 // pred_fallthru
      _
    // Predicated region
    $region14: #{tpu_custom_call.1} parent=1 // pred_check
      _
    $region15: #{tpu_custom_call.1} parent=1 // pred_check_branch
      %23 = sbr.rel (0) target = $region17
    $region16: #{tpu_custom_call.1} parent=1 // pred_region
      %s25 = ssub.s32 32, 32
      %26 = vsyncadd [#allocation3], %s25
      %s28 = sshll.u32 [#allocation2], 4
      %s29 = int_to_ptr.vmem [resolvable:$true] %s28
      %31 = dma.hbm_to_vmem [thread:$0]  %s3, 32, %s29, [#allocation3]
    $region17: #{tpu_custom_call.1} parent=1 // pred_fallthru
      _
    // Predicated region
    $region18: #{tpu_custom_call.1} parent=1 // pred_check
      _
    $region19: #{tpu_custom_call.1} parent=1 // pred_check_branch
      %33 = sbr.rel (0) target = $region21
    $region20: #{tpu_custom_call.1} parent=1 // pred_region
      _
    $region21: #{tpu_custom_call.1} parent=1 // pred_fallthru
      _
    // Predicated region
    $region22: #{tpu_custom_call.1} parent=1 // pred_check
      _
    $region23: #{tpu_custom_call.1} parent=1 // pred_check_branch
      %35 = sbr.rel (0) target = $region25
    $region24: #{tpu_custom_call.1} parent=1 // pred_region
      _
    $region25: #{tpu_custom_call.1} parent=1 // pred_fallthru
      _
    // Predicated region
    $region26: #{tpu_custom_call.1} parent=1 // pred_check
      _
    $region27: #{tpu_custom_call.1} parent=1 // pred_check_branch
      %37 = sbr.rel (0) target = $region29
    $region28: #{tpu_custom_call.1} parent=1 // pred_region
      _
    $region29: #{tpu_custom_call.1} parent=1 // pred_fallthru
      _
    // Predicated region
    $region30: #{tpu_custom_call.1} parent=1 // pred_check
      _
    $region31: #{tpu_custom_call.1} parent=1 // pred_check_branch
      %39 = sbr.rel (0) target = $region33
    $region32: #{tpu_custom_call.1} parent=1 // pred_region
      _
    $region33: #{tpu_custom_call.1} parent=1 // pred_fallthru
      _
    // Predicated region
    $region34: #{tpu_custom_call.1} parent=1 // pred_check
      _
    $region35: #{tpu_custom_call.1} parent=1 // pred_check_branch
      %41 = sbr.rel (0) target = $region37
    $region36: #{tpu_custom_call.1} parent=1 // pred_region
      _
    $region37: #{tpu_custom_call.1} parent=1 // pred_fallthru
      _
    // Predicated region
    $region38: #{tpu_custom_call.1} parent=1 // pred_check
      _
    $region39: #{tpu_custom_call.1} parent=1 // pred_check_branch
      %43 = sbr.rel (0) target = $region41
    $region40: #{tpu_custom_call.1} parent=1 // pred_region
      %44 = dma.done [#allocation3], 32
    $region41: #{tpu_custom_call.1} parent=1 // pred_fallthru
      _
    %v46 = vld [vmem:[%s0] sm:$0xff]
    %v47 = vld [vmem:[%s0 + $0x8] sm:$0xff]
    %v48 = vld [vmem:[#allocation2] sm:$0x3]
    %v50 = vrot.slane %v48, 7
    %v52 = vsub.f32 %v48, %v50
    %v53 = vld [vmem:[%s1] sm:$0xff]
    %v54 = vld [vmem:[%s1 + $0x8] sm:$0xff]
    %v55 = vlaneseq
    %v56 = vshrl.u32 %v55, 7
    %v57 = vsub.s32 0, %v56
    %v58 = vrot.slane %v48, %v57
    %v59 = vadd.f32 %v46, %v58
    %v60 = vadd.f32 %v47, %v58
    %62 = vset.pattern.permute.xlu0 0
    %63 = vperm.xlu0 %62, %v53
    %v64 = vpop.permute.xlu0 %63
    %67 = vset.pattern.permute.xlu0 0
    %68 = vperm.xlu0 %67, %v54
    %v69 = vpop.permute.xlu0 %68
    %v71 = vlaneseq
    %v72 = vshrl.u32 %v71, 7
    %v73 = vsub.s32 1, %v72
    %v74 = vrot.slane %v52, %v73
    %v75 = vmul.f32 %v64, %v74
    %v76 = vmul.f32 %v69, %v74
    %v77 = vadd.f32 %v59, %v75
    %v78 = vadd.f32 %v60, %v76
    %vm79 = vcmask 261120
    %v80 = vsel %vm79, %v77, 0.0
    %81 = vadd.xlane.f32.xlu0 %v80
    %v82 = vpop.xlane.xlu0 %81
    %v83 = vsel %vm79, %v78, 0.0
    %84 = vadd.xlane.f32.xlu0 %v83
    %v85 = vpop.xlane.xlu0 %84
    %v86 = vrcp.pop 32.0
    %v87 = vmul.f32 %v82, %v86
    %v88 = vmul.f32 %v85, %v86
    %v89 = vsub.f32 %v77, %v87
    %v90 = vsub.f32 %v78, %v88
    %v91 = vmul.f32 %v89, %v89
    %v92 = vmul.f32 %v90, %v90
    %v93 = vsel %vm79, %v91, 0.0
    %94 = vadd.xlane.f32.xlu0 %v93
    %v95 = vpop.xlane.xlu0 %94
    %v96 = vsel %vm79, %v92, 0.0
    %97 = vadd.xlane.f32.xlu0 %v96
    %v98 = vpop.xlane.xlu0 %97
    %v99 = vmul.f32 %v95, %v86
    %v100 = vmul.f32 %v98, %v86
    %v101 = vadd.f32 %v99, 1e-05
    %v102 = vadd.f32 %v100, 1e-05
    %v103 = vrsqrt.pop %v101
    %v104 = vrsqrt.pop %v102
    %v105 = vmul.f32 %v89, %v103
    %v106 = vmul.f32 %v90, %v104
    %v107 = vpack.c.bf16 %v106, %v105
    %v108 = vld [vmem:[%s4] sm:$0xf]
    %v109 = vld [vmem:[%s4 + $0x4] sm:$0xf]
    %v110 = vld [vmem:[%s4 + $0x8] sm:$0xf]
    %v111 = vld [vmem:[%s4 + $0xc] sm:$0xf]
    %v112 = vld [vmem:[%s5] sm:$0x1]
    %v114 = vlaneseq
    %v115 = vshrl.u32 %v114, 7
    %v116 = vsub.s32 0, %v115
    %v117 = vrot.slane %v112, %v116
    %v123 = vunpack.c.l.b16 %v108
    %v124 = vunpack.c.l.b16 %v109
    %v125 = vunpack.c.l.b16 %v110
    %v126 = vunpack.c.l.b16 %v111
    %v127 = vpack.c.b16 %v124, %v123
    %v128 = vpack.c.b16 %v126, %v125
    %v132 = vsel %vm79, %v107, 0
    %134 = vmatprep.subr.bf16.mxu0 0
    %135 = vmatpush1.bf16.msra.mxu0 %v127
    %136 = vmatprep.subr.bf16.mxu0 0
    %137 = vmatpush1.bf16.msra.mxu0 %v128
    %138 = vmatprep.subr.bf16.mxu0 0
    %139 = vmatpush1.bf16.msra.mxu0 0
    %140 = vmatprep.subr.bf16.mxu0 0
    %141 = vmatpush1.bf16.msra.mxu0 0
    %142 = vmatprep.subr.bf16.mxu0 0
    %143 = vmatpush1.bf16.msra.mxu0 0
    %144 = vmatprep.subr.bf16.mxu0 0
    %145 = vmatpush1.bf16.msra.mxu0 0
    %146 = vmatprep.subr.bf16.mxu0 0
    %147 = vmatpush1.bf16.msra.mxu0 0
    %148 = vmatprep.subr.bf16.mxu0 0
    %149 = vmatpush1.bf16.msra.mxu0 0
    %150 = vmatprep.subr.bf16.mxu0 0
    %151 = vmatpush1.bf16.msra.mxu0 0
    %152 = vmatprep.subr.bf16.mxu0 0
    %153 = vmatpush1.bf16.msra.mxu0 0
    %154 = vmatprep.subr.bf16.mxu0 0
    %155 = vmatpush1.bf16.msra.mxu0 0
    %156 = vmatprep.subr.bf16.mxu0 0
    %157 = vmatpush1.bf16.msra.mxu0 0
    %158 = vmatprep.subr.bf16.mxu0 0
    %159 = vmatpush1.bf16.msra.mxu0 0
    %160 = vmatprep.subr.bf16.mxu0 0
    %161 = vmatpush1.bf16.msra.mxu0 0
    %162 = vmatprep.subr.bf16.mxu0 0
    %163 = vmatpush1.bf16.msra.mxu0 0
    %164 = vmatprep.subr.bf16.mxu0 0
    %165 = vmatpush1.bf16.msra.mxu0 0
    %166 = vmatprep.mubr.bf16.mxu0 0
    %167 = vmatmul.mubr.bf16.gmra.mrb[0].mxu0 %v132
    %v168 = vpop.f32.mrb[0].mxu0
    %v169 = vadd.f32 %v117, %v168
    %v170 = vpop.f32.mrb[0].mxu0
    %v171 = vpop.f32.mrb[0].mxu0
    %v172 = vadd.f32 %v117, %v171
    %v173 = vpop.f32.mrb[0].mxu0
    %174 = vdwg.mxu0
    %v175 = vld [vmem:[%s2] sm:$0xff]
    %v176 = vld [vmem:[%s2 + $0x8] sm:$0xff]
    %v177 = vlaneseq
    %v178 = vand.u32 %v177, 127
    %179 = vset.pattern.permute.xlu0 0
    %180 = vperm.xlu0 %179, %v175
    %v181 = vpop.permute.xlu0 %180
    %182 = vset.pattern.permute.xlu0 0
    %183 = vperm.xlu0 %182, %v176
    %v184 = vpop.permute.xlu0 %183
    %vm185 = vcmp.eq.s32.totalorder %v178, %v181
    %vm186 = vcmp.eq.s32.totalorder %v178, %v184
    %v187 = vsel %vm185, 1, 0
    %v188 = vsel %vm186, 1, 0
    %v189 = vcvt.s32.f32 %v187
    %v190 = vcvt.s32.f32 %v188
    %v191 = vld [vmem:[%s6] sm:$0xff]
    %v192 = vld [vmem:[%s6 + $0x8] sm:$0xff]
    %vm193 = vcmask 130048
    %v195 = vsel %vm193, %v189, 0
    %v198 = vsel %vm193, %v190, 0
    %200 = vmatprep.subr.mxu0 0.0
    %201 = vmatpush1.msra.mxu0 %v191
    %202 = vmatprep.subr.mxu0 0.0
    %203 = vmatpush1.msra.mxu0 %v192
    %204 = vmatprep.subr.mxu0 0.0
    %205 = vmatpush1.msra.mxu0 0.0
    %206 = vmatprep.subr.mxu0 0.0
    %207 = vmatpush1.msra.mxu0 0.0
    %208 = vmatprep.subr.mxu0 0.0
    %209 = vmatpush1.msra.mxu0 0.0
    %210 = vmatprep.subr.mxu0 0.0
    %211 = vmatpush1.msra.mxu0 0.0
    %212 = vmatprep.subr.mxu0 0.0
    %213 = vmatpush1.msra.mxu0 0.0
    %214 = vmatprep.subr.mxu0 0.0
    %215 = vmatpush1.msra.mxu0 0.0
    %216 = vmatprep.subr.mxu0 0.0
    %217 = vmatpush1.msra.mxu0 0.0
    %218 = vmatprep.subr.mxu0 0.0
    %219 = vmatpush1.msra.mxu0 0.0
    %220 = vmatprep.subr.mxu0 0.0
    %221 = vmatpush1.msra.mxu0 0.0
    %222 = vmatprep.subr.mxu0 0.0
    %223 = vmatpush1.msra.mxu0 0.0
    %224 = vmatprep.subr.mxu0 0.0
    %225 = vmatpush1.msra.mxu0 0.0
    %226 = vmatprep.subr.mxu0 0.0
    %227 = vmatpush1.msra.mxu0 0.0
    %228 = vmatprep.subr.mxu0 0.0
    %229 = vmatpush1.msra.mxu0 0.0
    %230 = vmatprep.subr.mxu0 0.0
    %231 = vmatpush1.msra.mxu0 0.0
    %232 = vmatprep.subr.mxu0 0.0
    %233 = vmatpush1.msra.mxu0 0.0
    %234 = vmatprep.subr.mxu0 0.0
    %235 = vmatpush1.msra.mxu0 0.0
    %236 = vmatprep.subr.mxu0 0.0
    %237 = vmatpush1.msra.mxu0 0.0
    %238 = vmatprep.subr.mxu0 0.0
    %239 = vmatpush1.msra.mxu0 0.0
    %240 = vmatprep.subr.mxu0 0.0
    %241 = vmatpush1.msra.mxu0 0.0
    %242 = vmatprep.subr.mxu0 0.0
    %243 = vmatpush1.msra.mxu0 0.0
    %244 = vmatprep.subr.mxu0 0.0
    %245 = vmatpush1.msra.mxu0 0.0
    %246 = vmatprep.subr.mxu0 0.0
    %247 = vmatpush1.msra.mxu0 0.0
    %248 = vmatprep.subr.mxu0 0.0
    %249 = vmatpush1.msra.mxu0 0.0
    %250 = vmatprep.subr.mxu0 0.0
    %251 = vmatpush1.msra.mxu0 0.0
    %252 = vmatprep.subr.mxu0 0.0
    %253 = vmatpush1.msra.mxu0 0.0
    %254 = vmatprep.subr.mxu0 0.0
    %255 = vmatpush1.msra.mxu0 0.0
    %256 = vmatprep.subr.mxu0 0.0
    %257 = vmatpush1.msra.mxu0 0.0
    %258 = vmatprep.subr.mxu0 0.0
    %259 = vmatpush1.msra.mxu0 0.0
    %260 = vmatprep.subr.mxu0 0.0
    %261 = vmatpush1.msra.mxu0 0.0
    %262 = vmatprep.subr.mxu0 0.0
    %263 = vmatpush1.msra.mxu0 0.0
    %264 = vmatprep.mubr.f32.mxu0 0.0
    %265 = vmatmul.mubr.f32.gmra.mrb[0].mxu0 %v195
    %v266 = vpop.f32.mrb[0].mxu0
    %v267 = vadd.f32 0.0, %v266
    %v268 = vpop.f32.mrb[0].mxu0
    %269 = vmatprep.mubr.f32.mxu0 0.0
    %270 = vmatmul.mubr.f32.gmra.mrb[0].mxu0 %v198
    %v271 = vpop.f32.mrb[0].mxu0
    %v272 = vadd.f32 0.0, %v271
    %v273 = vpop.f32.mrb[0].mxu0
    %274 = vdwg.mxu0
    %v275 = vadd.f32 %v169, %v267
    %v276 = vadd.f32 %v172, %v272
    %v277 = vsel %vm79, %v275, 0.0
    %278 = vadd.xlane.f32.xlu0 %v277
    %v279 = vpop.xlane.xlu0 %278
    %v280 = vsel %vm79, %v276, 0.0
    %281 = vadd.xlane.f32.xlu0 %v280
    %v282 = vpop.xlane.xlu0 %281
    %v283 = vmul.f32 %v279, %v86
    %v284 = vmul.f32 %v282, %v86
    %v285 = vsub.f32 %v275, %v283
    %v286 = vsub.f32 %v276, %v284
    %v287 = vmul.f32 %v285, %v285
    %v288 = vmul.f32 %v286, %v286
    %v289 = vsel %vm79, %v287, 0.0
    %290 = vadd.xlane.f32.xlu0 %v289
    %v291 = vpop.xlane.xlu0 %290
    %v292 = vsel %vm79, %v288, 0.0
    %293 = vadd.xlane.f32.xlu0 %v292
    %v294 = vpop.xlane.xlu0 %293
    %v295 = vmul.f32 %v291, %v86
    %v296 = vmul.f32 %v294, %v86
    %v297 = vadd.f32 %v295, 1e-05
    %v298 = vadd.f32 %v296, 1e-05
    %v299 = vrsqrt.pop %v297
    %v300 = vrsqrt.pop %v298
    %v301 = vmul.f32 %v285, %v299
    %v302 = vmul.f32 %v286, %v300
    %v303 = vld [vmem:[%s7] sm:$0x1]
    %v305 = vlaneseq
    %v306 = vshrl.u32 %v305, 7
    %v307 = vsub.s32 0, %v306
    %v308 = vrot.slane %v303, %v307
    %v310 = vmul.f32 %v301, %v308
    %v311 = vmul.f32 %v302, %v308
    %v312 = vld [vmem:[%s8] sm:$0x1]
    %v314 = vlaneseq
    %v315 = vshrl.u32 %v314, 7
    %v316 = vsub.s32 0, %v315
    %v317 = vrot.slane %v312, %v316
    %v319 = vadd.f32 %v310, %v317
    %v320 = vadd.f32 %v311, %v317
    %321 = vst.msk [vmem:[#allocation5] sm:$0xff] %vm79, %v319
    %322 = vst.msk [vmem:[#allocation5 + $0x8] sm:$0xff] %vm79, %v320
    // Predicated region
    $region42: #{tpu_custom_call.1} parent=1 // pred_check
      _
    $region43: #{tpu_custom_call.1} parent=1 // pred_check_branch
      %324 = sbr.rel (0) target = $region45
    $region44: #{tpu_custom_call.1} parent=1 // pred_region
      %s326 = ssub.s32 256, 256
      %327 = vsyncadd [#allocation4], %s326
      %s328 = sshll.u32 [#allocation5], 4
      %s329 = int_to_ptr.vmem [resolvable:$true] %s328
      %334 = dma.vmem_to_hbm [thread:$0]  %s329, 256, %s9, [#allocation4], 128, 128, 8
    $region45: #{tpu_custom_call.1} parent=1 // pred_fallthru
      _
    // Predicated region
    $region46: #{tpu_custom_call.1} parent=1 // pred_check
      _
    $region47: #{tpu_custom_call.1} parent=1 // pred_check_branch
      %336 = sbr.rel (0) target = $region49
    $region48: #{tpu_custom_call.1} parent=1 // pred_region
      %337 = dma.done [#allocation4], 256
    $region49: #{tpu_custom_call.1} parent=1 // pred_fallthru
      _
    %338 = vsyncpa [#allocation3], 1
    %339 = vsyncpa [#allocation4], 1

</llo_original>
